<compile_context>
chip_gen: v7x
topology: tpu7x:2x2x1
jax: 0.10.0
libtpu: 0.0.40
codegen_flags: <defaults>
</compile_context>

<pallas_src>
import math
import jax
import jax.numpy as jnp
from jax import lax
from jax.experimental import pallas as pl
from jax.experimental.pallas import tpu as pltpu

HIDDEN_DIM = 32
INPUT_DIM = 7
NUM_LAYERS = 2   # structure below is specialized to the module's num_layers = 2
OUTPUT_DIM = 3


def _slab_offsets(hidden_dim):
    """Row offsets of each section inside the packed weight slab (lanes = 2H)."""
    h2 = 2 * hidden_dim
    r_wih0 = 0            # rows [0, D)              : [W_ih0^T | 0]                   (D, 2H)
    r_b0 = 8              # row  8                   : [b_ih0+b_hh0 | b_ih1+b_hh1]     (1, 2H)
    r_wbig = 16           # rows [16, 16+2H)         : [[W_hh0^T, W_ih1^T],[0,W_hh1^T]] (2H, 2H)
    r_wfc = 16 + h2       # rows [16+2H, 16+4H)      : [[0],[W_fc^T]] in lanes [0, O)   (2H, O)
    r_bfc = 16 + 2 * h2   # row  16+4H               : b_fc in lanes [0, O)             (1, O)
    rows = r_bfc + 8      # pad to an 8-sublane multiple
    return r_wih0, r_b0, r_wbig, r_wfc, r_bfc, rows


def rnn_predictor_kernel(x_ref, w_ref, out_ref):
    # x_ref: (B, T, D) f32    w_ref: packed (rows, 2H) f32    out_ref: (B, O) f32
    B, T, D = x_ref.shape
    H2 = w_ref.shape[1]
    H = H2 // 2
    O = out_ref.shape[1]
    r_wih0, r_b0, r_wbig, r_wfc, r_bfc, _ = _slab_offsets(H)

    # ---- Static, loop-invariant views/loads from the packed slab. ----
    wih0 = w_ref[r_wih0:r_wih0 + D, :]         # (D, 2H)  = [W_ih0^T | 0]
    b0b = w_ref[r_b0:r_b0 + 1, :]              # (1, 2H)  = [b_ih0+b_hh0 | b_ih1+b_hh1]
    wbig = w_ref[r_wbig:r_wbig + H2, :]        # (2H, 2H) = [[W_hh0^T, W_ih1^T],[0, W_hh1^T]]
    wfc = w_ref[r_wfc:r_wfc + H2, 0:O]         # (2H, O)  = [[0],[W_fc^T]]
    bfc = w_ref[r_bfc:r_bfc + 1, 0:O]          # (1, O)

    # ---- Hoisted input projection: the full per-step additive term (no recurrence). ----
    # addend[:, t, :] = [x_t @ W_ih0^T + b_ih0 + b_hh0 | b_ih1 + b_hh1]
    xf = x_ref[...].reshape(B * T, D)
    addend = (jnp.dot(xf, wih0, preferred_element_type=jnp.float32) + b0b
              ).reshape(B, T, H2)

    # ---- Layer-skewed fused recurrence: s_t = [h0_t | h1_{t-1}]. ----
    # t = 0: h0_0 = tanh(xh0_0); the h1 half of the state must be EXACTLY 0.
    lane = lax.broadcasted_iota(jnp.int32, (B, H2), 1)
    s = jnp.where(lane < H, jnp.tanh(addend[:, 0, :]), 0.0)

    # t = 1 .. T-1: one fused (B,2H)@(2H,2H) MXU pass + one tanh per step (fully unrolled).
    for t in range(1, T):
        s = jnp.tanh(jnp.dot(s, wbig, preferred_element_type=jnp.float32)
                     + addend[:, t, :])

    # Epilogue layer-1-only step: upper lane half becomes h1_{T-1}
    # (lower half becomes garbage, but it only feeds the zero rows of wfc).
    s = jnp.tanh(jnp.dot(s, wbig, preferred_element_type=jnp.float32) + b0b)

    # ---- FC head: the zero-padded rows of wfc select the h1 half — no lane slicing. ----
    out_ref[...] = jnp.dot(s, wfc, preferred_element_type=jnp.float32) + bfc


def prepare_params(p):
    """One-time packing of all weights/biases into a single VMEM slab (NOT per forward)."""
    H = p["W_hh0"].shape[0]
    D = p["W_ih0"].shape[1]
    O = p["W_fc"].shape[0]
    H2 = 2 * H
    _, r_b0, r_wbig, r_wfc, r_bfc, rows = _slab_offsets(H)
    assert D <= r_b0, "input_dim must fit in the first 8-sublane section"

    f32 = jnp.float32
    slab = jnp.zeros((rows, H2), f32)
    slab = slab.at[0:D, 0:H].set(jnp.asarray(p["W_ih0"].T, f32))
    slab = slab.at[r_b0, 0:H].set(jnp.asarray(p["b_ih0"] + p["b_hh0"], f32))
    slab = slab.at[r_b0, H:H2].set(jnp.asarray(p["b_ih1"] + p["b_hh1"], f32))
    slab = slab.at[r_wbig:r_wbig + H, 0:H].set(jnp.asarray(p["W_hh0"].T, f32))
    slab = slab.at[r_wbig:r_wbig + H, H:H2].set(jnp.asarray(p["W_ih1"].T, f32))
    slab = slab.at[r_wbig + H:r_wbig + H2, H:H2].set(jnp.asarray(p["W_hh1"].T, f32))
    slab = slab.at[r_wfc + H:r_wfc + H2, 0:O].set(jnp.asarray(p["W_fc"].T, f32))
    slab = slab.at[r_bfc, 0:O].set(jnp.asarray(p["b_fc"], f32))
    return slab


@jax.jit
def rnn_predictor_forward(x, packed_weights):
    """x: (B, T, D) f32, packed_weights: prepare_params output. Returns (B, O)."""
    B = x.shape[0]
    vmem = pl.BlockSpec(memory_space=pltpu.MemorySpace.VMEM)
    return pl.pallas_call(
        rnn_predictor_kernel,
        out_shape=jax.ShapeDtypeStruct((B, OUTPUT_DIM), jnp.float32),
        in_specs=[vmem, vmem],
        out_specs=vmem,
    )(x.astype(jnp.float32), packed_weights)


def init_params(key, input_dim, hidden_dim, output_dim):
    """Deterministic init mimicking PyTorch's U(-1/sqrt(H), 1/sqrt(H))."""
    keys = jax.random.split(key, 11)
    bound = 1.0 / math.sqrt(hidden_dim)

    def u(k, shape):
        return jax.random.uniform(k, shape, jnp.float32, -bound, bound)

    return {
        "W_ih0": u(keys[0], (hidden_dim, input_dim)),
        "W_hh0": u(keys[1], (hidden_dim, hidden_dim)),
        "b_ih0": u(keys[2], (hidden_dim,)),
        "b_hh0": u(keys[3], (hidden_dim,)),
        "W_ih1": u(keys[4], (hidden_dim, hidden_dim)),
        "W_hh1": u(keys[5], (hidden_dim, hidden_dim)),
        "b_ih1": u(keys[6], (hidden_dim,)),
        "b_hh1": u(keys[7], (hidden_dim,)),
        "W_fc":  u(keys[8], (output_dim, hidden_dim)),
        "b_fc":  u(keys[9], (output_dim,)),
    }


def reference_forward(x, p):
    """Pure-JAX reference of the PyTorch forward (correctness check)."""
    B, T, D = x.shape
    H = p["W_hh0"].shape[0]
    h0 = jnp.zeros((B, H), jnp.float32)
    h1 = jnp.zeros((B, H), jnp.float32)
    for t in range(T):
        xt = x[:, t, :]
        h0 = jnp.tanh(xt @ p["W_ih0"].T + p["b_ih0"] + h0 @ p["W_hh0"].T + p["b_hh0"])
        h1 = jnp.tanh(h0 @ p["W_ih1"].T + p["b_ih1"] + h1 @ p["W_hh1"].T + p["b_hh1"])
    return h1 @ p["W_fc"].T + p["b_fc"]


if __name__ == "__main__":
    key = jax.random.PRNGKey(0)
    k_x, k_p = jax.random.split(key)

    B, T = 2, 8
    x = jax.random.normal(k_x, (B, T, INPUT_DIM), jnp.float32)
    params = init_params(k_p, INPUT_DIM, HIDDEN_DIM, OUTPUT_DIM)

    # One-time weight packing (outside the hot path).
    packed = jax.block_until_ready(prepare_params(params))

    out = jax.block_until_ready(rnn_predictor_forward(x, packed))

    ref = reference_forward(x, params)
    assert out.shape == (B, OUTPUT_DIM)
    # Both kernel and reference use default (bf16-truncated) MXU precision — intentional.
    assert jnp.allclose(out, ref, atol=2e-4, rtol=1e-3), (
        f"max abs diff = {jnp.max(jnp.abs(out - ref))}")

    print("KERNEL_OK")
</pallas_src>

<mosaic_0001>
module attributes {stable_mosaic.version = 11 : i64} {
  func.func @rnn_predictor_kernel(%arg0: memref<2x8x7xf32, #tpu.memory_space<vmem>>, %arg1: memref<152x64xf32, #tpu.memory_space<vmem>>, %arg2: memref<2x3xf32, #tpu.memory_space<vmem>>) attributes {dimension_semantics = [], scalar_prefetch = 0 : i64, scratch_operands = 0 : i64, tpu.core_type = #tpu.core_type<tc>} {
    %c0 = arith.constant 0 : index
    %c0_0 = arith.constant 0 : index
    %0 = vector.load %arg1[%c0, %c0_0] : memref<152x64xf32, #tpu.memory_space<vmem>>, vector<7x64xf32>
    %c8 = arith.constant 8 : index
    %c0_1 = arith.constant 0 : index
    %1 = vector.load %arg1[%c8, %c0_1] : memref<152x64xf32, #tpu.memory_space<vmem>>, vector<1x64xf32>
    %c16 = arith.constant 16 : index
    %c0_2 = arith.constant 0 : index
    %2 = vector.load %arg1[%c16, %c0_2] : memref<152x64xf32, #tpu.memory_space<vmem>>, vector<64x64xf32>
    %c80 = arith.constant 80 : index
    %c0_3 = arith.constant 0 : index
    %3 = vector.load %arg1[%c80, %c0_3] : memref<152x64xf32, #tpu.memory_space<vmem>>, vector<64x3xf32>
    %c144 = arith.constant 144 : index
    %c0_4 = arith.constant 0 : index
    %4 = vector.load %arg1[%c144, %c0_4] : memref<152x64xf32, #tpu.memory_space<vmem>>, vector<1x3xf32>
    %c0_5 = arith.constant 0 : index
    %c0_6 = arith.constant 0 : index
    %c0_7 = arith.constant 0 : index
    %5 = vector.load %arg0[%c0_5, %c0_6, %c0_7] : memref<2x8x7xf32, #tpu.memory_space<vmem>>, vector<2x8x7xf32>
    %6 = vector.shape_cast %5 : vector<2x8x7xf32> to vector<16x7xf32>
    %cst = arith.constant dense<0.000000e+00> : vector<16x64xf32>
    %7 = tpu.matmul %6, %0, %cst {dimension_numbers = #tpu.dot_dimension_numbers<[1], [0], [0], [1], [0, 0, 1, 1], [], []>} : vector<16x7xf32>, vector<7x64xf32>, vector<16x64xf32> -> vector<16x64xf32>
    %8 = vector.broadcast %1 : vector<1x64xf32> to vector<16x64xf32>
    %9 = arith.addf %7, %8 : vector<16x64xf32>
    %10 = vector.shape_cast %9 : vector<16x64xf32> to vector<2x8x64xf32>
    %11 = tpu.iota {dimensions = array<i32: 1>} : vector<2x64xi32>
    %c32_i32 = arith.constant 32 : i32
    %12 = vector.broadcast %c32_i32 : i32 to vector<2x64xi32>
    %13 = arith.cmpi slt, %11, %12 : vector<2x64xi32>
    %14 = vector.extract_strided_slice %10 {offsets = [0, 0, 0], sizes = [2, 1, 64], strides = [1, 1, 1]} : vector<2x8x64xf32> to vector<2x1x64xf32>
    %15 = vector.shape_cast %14 : vector<2x1x64xf32> to vector<2x64xf32>
    %16 = math.tanh %15 : vector<2x64xf32>
    %cst_8 = arith.constant 0.000000e+00 : f32
    %17 = vector.broadcast %cst_8 : f32 to vector<2x64xf32>
    %18 = arith.select %13, %16, %17 : vector<2x64xi1>, vector<2x64xf32>
    %cst_9 = arith.constant dense<0.000000e+00> : vector<2x64xf32>
    %19 = tpu.matmul %18, %2, %cst_9 {dimension_numbers = #tpu.dot_dimension_numbers<[1], [0], [0], [1], [0, 0, 1, 1], [], []>} : vector<2x64xf32>, vector<64x64xf32>, vector<2x64xf32> -> vector<2x64xf32>
    %20 = vector.extract_strided_slice %10 {offsets = [0, 1, 0], sizes = [2, 1, 64], strides = [1, 1, 1]} : vector<2x8x64xf32> to vector<2x1x64xf32>
    %21 = vector.shape_cast %20 : vector<2x1x64xf32> to vector<2x64xf32>
    %22 = arith.addf %19, %21 : vector<2x64xf32>
    %23 = math.tanh %22 : vector<2x64xf32>
    %cst_10 = arith.constant dense<0.000000e+00> : vector<2x64xf32>
    %24 = tpu.matmul %23, %2, %cst_10 {dimension_numbers = #tpu.dot_dimension_numbers<[1], [0], [0], [1], [0, 0, 1, 1], [], []>} : vector<2x64xf32>, vector<64x64xf32>, vector<2x64xf32> -> vector<2x64xf32>
    %25 = vector.extract_strided_slice %10 {offsets = [0, 2, 0], sizes = [2, 1, 64], strides = [1, 1, 1]} : vector<2x8x64xf32> to vector<2x1x64xf32>
    %26 = vector.shape_cast %25 : vector<2x1x64xf32> to vector<2x64xf32>
    %27 = arith.addf %24, %26 : vector<2x64xf32>
    %28 = math.tanh %27 : vector<2x64xf32>
    %cst_11 = arith.constant dense<0.000000e+00> : vector<2x64xf32>
    %29 = tpu.matmul %28, %2, %cst_11 {dimension_numbers = #tpu.dot_dimension_numbers<[1], [0], [0], [1], [0, 0, 1, 1], [], []>} : vector<2x64xf32>, vector<64x64xf32>, vector<2x64xf32> -> vector<2x64xf32>
    %30 = vector.extract_strided_slice %10 {offsets = [0, 3, 0], sizes = [2, 1, 64], strides = [1, 1, 1]} : vector<2x8x64xf32> to vector<2x1x64xf32>
    %31 = vector.shape_cast %30 : vector<2x1x64xf32> to vector<2x64xf32>
    %32 = arith.addf %29, %31 : vector<2x64xf32>
    %33 = math.tanh %32 : vector<2x64xf32>
    %cst_12 = arith.constant dense<0.000000e+00> : vector<2x64xf32>
    %34 = tpu.matmul %33, %2, %cst_12 {dimension_numbers = #tpu.dot_dimension_numbers<[1], [0], [0], [1], [0, 0, 1, 1], [], []>} : vector<2x64xf32>, vector<64x64xf32>, vector<2x64xf32> -> vector<2x64xf32>
    %35 = vector.extract_strided_slice %10 {offsets = [0, 4, 0], sizes = [2, 1, 64], strides = [1, 1, 1]} : vector<2x8x64xf32> to vector<2x1x64xf32>
    %36 = vector.shape_cast %35 : vector<2x1x64xf32> to vector<2x64xf32>
    %37 = arith.addf %34, %36 : vector<2x64xf32>
    %38 = math.tanh %37 : vector<2x64xf32>
    %cst_13 = arith.constant dense<0.000000e+00> : vector<2x64xf32>
    %39 = tpu.matmul %38, %2, %cst_13 {dimension_numbers = #tpu.dot_dimension_numbers<[1], [0], [0], [1], [0, 0, 1, 1], [], []>} : vector<2x64xf32>, vector<64x64xf32>, vector<2x64xf32> -> vector<2x64xf32>
    %40 = vector.extract_strided_slice %10 {offsets = [0, 5, 0], sizes = [2, 1, 64], strides = [1, 1, 1]} : vector<2x8x64xf32> to vector<2x1x64xf32>
    %41 = vector.shape_cast %40 : vector<2x1x64xf32> to vector<2x64xf32>
    %42 = arith.addf %39, %41 : vector<2x64xf32>
    %43 = math.tanh %42 : vector<2x64xf32>
    %cst_14 = arith.constant dense<0.000000e+00> : vector<2x64xf32>
    %44 = tpu.matmul %43, %2, %cst_14 {dimension_numbers = #tpu.dot_dimension_numbers<[1], [0], [0], [1], [0, 0, 1, 1], [], []>} : vector<2x64xf32>, vector<64x64xf32>, vector<2x64xf32> -> vector<2x64xf32>
    %45 = vector.extract_strided_slice %10 {offsets = [0, 6, 0], sizes = [2, 1, 64], strides = [1, 1, 1]} : vector<2x8x64xf32> to vector<2x1x64xf32>
    %46 = vector.shape_cast %45 : vector<2x1x64xf32> to vector<2x64xf32>
    %47 = arith.addf %44, %46 : vector<2x64xf32>
    %48 = math.tanh %47 : vector<2x64xf32>
    %cst_15 = arith.constant dense<0.000000e+00> : vector<2x64xf32>
    %49 = tpu.matmul %48, %2, %cst_15 {dimension_numbers = #tpu.dot_dimension_numbers<[1], [0], [0], [1], [0, 0, 1, 1], [], []>} : vector<2x64xf32>, vector<64x64xf32>, vector<2x64xf32> -> vector<2x64xf32>
    %50 = vector.extract_strided_slice %10 {offsets = [0, 7, 0], sizes = [2, 1, 64], strides = [1, 1, 1]} : vector<2x8x64xf32> to vector<2x1x64xf32>
    %51 = vector.shape_cast %50 : vector<2x1x64xf32> to vector<2x64xf32>
    %52 = arith.addf %49, %51 : vector<2x64xf32>
    %53 = math.tanh %52 : vector<2x64xf32>
    %cst_16 = arith.constant dense<0.000000e+00> : vector<2x64xf32>
    %54 = tpu.matmul %53, %2, %cst_16 {dimension_numbers = #tpu.dot_dimension_numbers<[1], [0], [0], [1], [0, 0, 1, 1], [], []>} : vector<2x64xf32>, vector<64x64xf32>, vector<2x64xf32> -> vector<2x64xf32>
    %55 = vector.broadcast %1 : vector<1x64xf32> to vector<2x64xf32>
    %56 = arith.addf %54, %55 : vector<2x64xf32>
    %57 = math.tanh %56 : vector<2x64xf32>
    %cst_17 = arith.constant dense<0.000000e+00> : vector<2x3xf32>
    %58 = tpu.matmul %57, %3, %cst_17 {dimension_numbers = #tpu.dot_dimension_numbers<[1], [0], [0], [1], [0, 0, 1, 1], [], []>} : vector<2x64xf32>, vector<64x3xf32>, vector<2x3xf32> -> vector<2x3xf32>
    %59 = vector.broadcast %4 : vector<1x3xf32> to vector<2x3xf32>
    %60 = arith.addf %58, %59 : vector<2x3xf32>
    %c0_18 = arith.constant 0 : index
    %c0_19 = arith.constant 0 : index
    %61 = vector.load %arg2[%c0_18, %c0_19] : memref<2x3xf32, #tpu.memory_space<vmem>>, vector<2x3xf32>
    tpu.vector_store %arg2[%c0_18, %c0_19], %60 {strides = array<i32>} : memref<2x3xf32, #tpu.memory_space<vmem>>, vector<2x3xf32>,
    return
  }
}

</mosaic_0001>

<llo_original>
// kernel: rnn_predictor_forward.1
$region0: #{rnn_predictor_forward.1}
  #allocation0 [shape = 'u32[]', space=smem, size = 0x4, offset = 0x4, fixed_abs, tag = 'smem constant byte address 0x4 - core index']
  #allocation1 [shape = 'u32[144,128]{1,0:T(1,128)}', space=vmem, size = 0x12000, scoped, tag = 'internal scratch']
  %s0 = inlined_call_operand.vmem [shape: f32[2,8,7], index: 0, kind: input, shape index: {}]
  %s1 = inlined_call_operand.vmem [shape: f32[152,64], index: 1, kind: input, shape index: {}]
  %s2 = inlined_call_operand.hbm [shape: f32[2,3], index: 2, kind: output, shape index: {}]
  %s3 = sld [smem:[#allocation0]]
  $region18: #{rnn_predictor_forward.1} parent=0
    _
  %s5 = ssub.s32 1, %s3
  %s6 = scalar_select 0, %s5, %s3
  $region1: #{rnn_predictor_forward.1} parent=0
    #allocation2 [shape = 'u8[1024]{0}', space=vmem, size = 0x400, scoped, tag = 'output window, operand 0, single buffered']
    #allocation3 [shape = 's32[1]{0}', space=sflag, size = 0x4, scoped, tag = 'scoped memory for rnn_predictor_forward.1']
    %7 = vsyncpa [#allocation3], 0
    // Predicated region
    $region2: #{rnn_predictor_forward.1} parent=1 // pred_check
      _
    $region3: #{rnn_predictor_forward.1} parent=1 // pred_check_branch
      %9 = sbr.rel (0) target = $region5
    $region4: #{rnn_predictor_forward.1} parent=1 // pred_region
      _
    $region5: #{rnn_predictor_forward.1} parent=1 // pred_fallthru
      _
    // Predicated region
    $region6: #{rnn_predictor_forward.1} parent=1 // pred_check
      _
    $region7: #{rnn_predictor_forward.1} parent=1 // pred_check_branch
      %11 = sbr.rel (0) target = $region9
    $region8: #{rnn_predictor_forward.1} parent=1 // pred_region
      _
    $region9: #{rnn_predictor_forward.1} parent=1 // pred_fallthru
      _
    %v12 = vld [vmem:[%s1] sm:$0x7f]
    %v13 = vld [vmem:[%s1 + $0x8] sm:$0x1]
    %v14 = vld [vmem:[%s1 + $0x10] sm:$0xff]
    %v15 = vld [vmem:[%s1 + $0x18] sm:$0xff]
    %v16 = vld [vmem:[%s1 + $0x20] sm:$0xff]
    %v17 = vld [vmem:[%s1 + $0x28] sm:$0xff]
    %v18 = vld [vmem:[%s1 + $0x30] sm:$0xff]
    %v19 = vld [vmem:[%s1 + $0x38] sm:$0xff]
    %v20 = vld [vmem:[%s1 + $0x40] sm:$0xff]
    %v21 = vld [vmem:[%s1 + $0x48] sm:$0xff]
    %v22 = vld [vmem:[%s1 + $0x50] sm:$0xff]
    %v23 = vld [vmem:[%s1 + $0x58] sm:$0xff]
    %v24 = vld [vmem:[%s1 + $0x60] sm:$0xff]
    %v25 = vld [vmem:[%s1 + $0x68] sm:$0xff]
    %v26 = vld [vmem:[%s1 + $0x70] sm:$0xff]
    %v27 = vld [vmem:[%s1 + $0x78] sm:$0xff]
    %v28 = vld [vmem:[%s1 + $0x80] sm:$0xff]
    %v29 = vld [vmem:[%s1 + $0x88] sm:$0xff]
    %v30 = vld [vmem:[%s1 + $0x90] sm:$0x1]
    %v31 = vld [vmem:[%s0] sm:$0xff]
    %v32 = vld [vmem:[%s0 + $0x8] sm:$0xff]
    %v33 = vlaneseq
    %v34 = vshrl.u32 %v33, 7
    %v35 = vsub.s32 0, %v34
    %v36 = vrot.slane %v13, %v35
    %vm37 = vcmask 56320
    %v39 = vsel %vm37, %v31, 0
    %v42 = vsel %vm37, %v32, 0
    %vm44 = vcmask 1046528
    %v46 = vsel %vm44, %v12, 0
    %48 = vmatprep.subr.mxu0 0.0
    %49 = vmatpush1.msra.mxu0 %v46
    %50 = vmatprep.subr.mxu0 0.0
    %51 = vmatpush1.msra.mxu0 0.0
    %52 = vmatprep.subr.mxu0 0.0
    %53 = vmatpush1.msra.mxu0 0.0
    %54 = vmatprep.subr.mxu0 0.0
    %55 = vmatpush1.msra.mxu0 0.0
    %56 = vmatprep.subr.mxu0 0.0
    %57 = vmatpush1.msra.mxu0 0.0
    %58 = vmatprep.subr.mxu0 0.0
    %59 = vmatpush1.msra.mxu0 0.0
    %60 = vmatprep.subr.mxu0 0.0
    %61 = vmatpush1.msra.mxu0 0.0
    %62 = vmatprep.subr.mxu0 0.0
    %63 = vmatpush1.msra.mxu0 0.0
    %64 = vmatprep.subr.mxu0 0.0
    %65 = vmatpush1.msra.mxu0 0.0
    %66 = vmatprep.subr.mxu0 0.0
    %67 = vmatpush1.msra.mxu0 0.0
    %68 = vmatprep.subr.mxu0 0.0
    %69 = vmatpush1.msra.mxu0 0.0
    %70 = vmatprep.subr.mxu0 0.0
    %71 = vmatpush1.msra.mxu0 0.0
    %72 = vmatprep.subr.mxu0 0.0
    %73 = vmatpush1.msra.mxu0 0.0
    %74 = vmatprep.subr.mxu0 0.0
    %75 = vmatpush1.msra.mxu0 0.0
    %76 = vmatprep.subr.mxu0 0.0
    %77 = vmatpush1.msra.mxu0 0.0
    %78 = vmatprep.subr.mxu0 0.0
    %79 = vmatpush1.msra.mxu0 0.0
    %80 = vmatprep.subr.mxu0 0.0
    %81 = vmatpush1.msra.mxu0 0.0
    %82 = vmatprep.subr.mxu0 0.0
    %83 = vmatpush1.msra.mxu0 0.0
    %84 = vmatprep.subr.mxu0 0.0
    %85 = vmatpush1.msra.mxu0 0.0
    %86 = vmatprep.subr.mxu0 0.0
    %87 = vmatpush1.msra.mxu0 0.0
    %88 = vmatprep.subr.mxu0 0.0
    %89 = vmatpush1.msra.mxu0 0.0
    %90 = vmatprep.subr.mxu0 0.0
    %91 = vmatpush1.msra.mxu0 0.0
    %92 = vmatprep.subr.mxu0 0.0
    %93 = vmatpush1.msra.mxu0 0.0
    %94 = vmatprep.subr.mxu0 0.0
    %95 = vmatpush1.msra.mxu0 0.0
    %96 = vmatprep.subr.mxu0 0.0
    %97 = vmatpush1.msra.mxu0 0.0
    %98 = vmatprep.subr.mxu0 0.0
    %99 = vmatpush1.msra.mxu0 0.0
    %100 = vmatprep.subr.mxu0 0.0
    %101 = vmatpush1.msra.mxu0 0.0
    %102 = vmatprep.subr.mxu0 0.0
    %103 = vmatpush1.msra.mxu0 0.0
    %104 = vmatprep.subr.mxu0 0.0
    %105 = vmatpush1.msra.mxu0 0.0
    %106 = vmatprep.subr.mxu0 0.0
    %107 = vmatpush1.msra.mxu0 0.0
    %108 = vmatprep.subr.mxu0 0.0
    %109 = vmatpush1.msra.mxu0 0.0
    %110 = vmatprep.subr.mxu0 0.0
    %111 = vmatpush1.msra.mxu0 0.0
    %112 = vmatprep.mubr.f32.mxu0 0.0
    %113 = vmatmul.mubr.f32.gmra.mrb[0].mxu0 %v39
    %v114 = vpop.f32.mrb[0].mxu0
    %v115 = vadd.f32 %v36, %v114
    %v116 = vpop.f32.mrb[0].mxu0
    %117 = vmatprep.mubr.f32.mxu0 0.0
    %118 = vmatmul.mubr.f32.gmra.mrb[0].mxu0 %v42
    %v119 = vpop.f32.mrb[0].mxu0
    %v120 = vadd.f32 %v36, %v119
    %v121 = vpop.f32.mrb[0].mxu0
    %122 = vdwg.mxu0
    %v123 = vlaneseq
    %v124 = vand.u32 %v123, 127
    %vm125 = vcmp.lt.s32.totalorder %v124, 32
    %v126 = vtanh.pop %v115
    %v127 = vtanh.pop %v120
    %v130 = vrot.slane %v127, 7
    %vm131 = vcmask 1041409
    %v132 = vsel %vm131, %v130, %v126
    %v134 = vsel %vm125, %v132, 0.0
    %v137 = vrot.slane %v115, 1
    %v138 = vsel %vm131, %v120, %v137
    %vm140 = vcmask 523264
    %v142 = vsel %vm140, %v134, 0
    %144 = vmatprep.subr.mxu0 0.0
    %145 = vmatpush1.msra.mxu0 %v14
    %146 = vmatprep.subr.mxu0 0.0
    %147 = vmatpush1.msra.mxu0 %v15
    %148 = vmatprep.subr.mxu0 0.0
    %149 = vmatpush1.msra.mxu0 %v16
    %150 = vmatprep.subr.mxu0 0.0
    %151 = vmatpush1.msra.mxu0 %v17
    %152 = vmatprep.subr.mxu0 0.0
    %153 = vmatpush1.msra.mxu0 %v18
    %154 = vmatprep.subr.mxu0 0.0
    %155 = vmatpush1.msra.mxu0 %v19
    %156 = vmatprep.subr.mxu0 0.0
    %157 = vmatpush1.msra.mxu0 %v20
    %158 = vmatprep.subr.mxu0 0.0
    %159 = vmatpush1.msra.mxu0 %v21
    %160 = vmatprep.subr.mxu0 0.0
    %161 = vmatpush1.msra.mxu0 0.0
    %162 = vmatprep.subr.mxu0 0.0
    %163 = vmatpush1.msra.mxu0 0.0
    %164 = vmatprep.subr.mxu0 0.0
    %165 = vmatpush1.msra.mxu0 0.0
    %166 = vmatprep.subr.mxu0 0.0
    %167 = vmatpush1.msra.mxu0 0.0
    %168 = vmatprep.subr.mxu0 0.0
    %169 = vmatpush1.msra.mxu0 0.0
    %170 = vmatprep.subr.mxu0 0.0
    %171 = vmatpush1.msra.mxu0 0.0
    %172 = vmatprep.subr.mxu0 0.0
    %173 = vmatpush1.msra.mxu0 0.0
    %174 = vmatprep.subr.mxu0 0.0
    %175 = vmatpush1.msra.mxu0 0.0
    %176 = vmatprep.subr.mxu0 0.0
    %177 = vmatpush1.msra.mxu0 0.0
    %178 = vmatprep.subr.mxu0 0.0
    %179 = vmatpush1.msra.mxu0 0.0
    %180 = vmatprep.subr.mxu0 0.0
    %181 = vmatpush1.msra.mxu0 0.0
    %182 = vmatprep.subr.mxu0 0.0
    %183 = vmatpush1.msra.mxu0 0.0
    %184 = vmatprep.subr.mxu0 0.0
    %185 = vmatpush1.msra.mxu0 0.0
    %186 = vmatprep.subr.mxu0 0.0
    %187 = vmatpush1.msra.mxu0 0.0
    %188 = vmatprep.subr.mxu0 0.0
    %189 = vmatpush1.msra.mxu0 0.0
    %190 = vmatprep.subr.mxu0 0.0
    %191 = vmatpush1.msra.mxu0 0.0
    %192 = vmatprep.subr.mxu0 0.0
    %193 = vmatpush1.msra.mxu0 0.0
    %194 = vmatprep.subr.mxu0 0.0
    %195 = vmatpush1.msra.mxu0 0.0
    %196 = vmatprep.subr.mxu0 0.0
    %197 = vmatpush1.msra.mxu0 0.0
    %198 = vmatprep.subr.mxu0 0.0
    %199 = vmatpush1.msra.mxu0 0.0
    %200 = vmatprep.subr.mxu0 0.0
    %201 = vmatpush1.msra.mxu0 0.0
    %202 = vmatprep.subr.mxu0 0.0
    %203 = vmatpush1.msra.mxu0 0.0
    %204 = vmatprep.subr.mxu0 0.0
    %205 = vmatpush1.msra.mxu0 0.0
    %206 = vmatprep.subr.mxu0 0.0
    %207 = vmatpush1.msra.mxu0 0.0
    %208 = vmatprep.mubr.f32.mxu0 0.0
    %209 = vmatmul.mubr.f32.gmra.mrb[0].mxu0 %v142
    %v210 = vpop.f32.mrb[0].mxu0
    %v211 = vadd.f32 %v138, %v210
    %v212 = vpop.f32.mrb[0].mxu0
    %213 = vdwg.mxu0
    %v214 = vtanh.pop %v211
    %v215 = vrot.slane %v115, 2
    %v216 = vrot.slane %v120, 1
    %v217 = vsel %vm131, %v216, %v215
    %v220 = vsel %vm140, %v214, 0
    %222 = vmatprep.subr.mxu0 0.0
    %223 = vmatpush1.msra.mxu0 %v14
    %224 = vmatprep.subr.mxu0 0.0
    %225 = vmatpush1.msra.mxu0 %v15
    %226 = vmatprep.subr.mxu0 0.0
    %227 = vmatpush1.msra.mxu0 %v16
    %228 = vmatprep.subr.mxu0 0.0
    %229 = vmatpush1.msra.mxu0 %v17
    %230 = vmatprep.subr.mxu0 0.0
    %231 = vmatpush1.msra.mxu0 %v18
    %232 = vmatprep.subr.mxu0 0.0
    %233 = vmatpush1.msra.mxu0 %v19
    %234 = vmatprep.subr.mxu0 0.0
    %235 = vmatpush1.msra.mxu0 %v20
    %236 = vmatprep.subr.mxu0 0.0
    %237 = vmatpush1.msra.mxu0 %v21
    %238 = vmatprep.subr.mxu0 0.0
    %239 = vmatpush1.msra.mxu0 0.0
    %240 = vmatprep.subr.mxu0 0.0
    %241 = vmatpush1.msra.mxu0 0.0
    %242 = vmatprep.subr.mxu0 0.0
    %243 = vmatpush1.msra.mxu0 0.0
    %244 = vmatprep.subr.mxu0 0.0
    %245 = vmatpush1.msra.mxu0 0.0
    %246 = vmatprep.subr.mxu0 0.0
    %247 = vmatpush1.msra.mxu0 0.0
    %248 = vmatprep.subr.mxu0 0.0
    %249 = vmatpush1.msra.mxu0 0.0
    %250 = vmatprep.subr.mxu0 0.0
    %251 = vmatpush1.msra.mxu0 0.0
    %252 = vmatprep.subr.mxu0 0.0
    %253 = vmatpush1.msra.mxu0 0.0
    %254 = vmatprep.subr.mxu0 0.0
    %255 = vmatpush1.msra.mxu0 0.0
    %256 = vmatprep.subr.mxu0 0.0
    %257 = vmatpush1.msra.mxu0 0.0
    %258 = vmatprep.subr.mxu0 0.0
    %259 = vmatpush1.msra.mxu0 0.0
    %260 = vmatprep.subr.mxu0 0.0
    %261 = vmatpush1.msra.mxu0 0.0
    %262 = vmatprep.subr.mxu0 0.0
    %263 = vmatpush1.msra.mxu0 0.0
    %264 = vmatprep.subr.mxu0 0.0
    %265 = vmatpush1.msra.mxu0 0.0
    %266 = vmatprep.subr.mxu0 0.0
    %267 = vmatpush1.msra.mxu0 0.0
    %268 = vmatprep.subr.mxu0 0.0
    %269 = vmatpush1.msra.mxu0 0.0
    %270 = vmatprep.subr.mxu0 0.0
    %271 = vmatpush1.msra.mxu0 0.0
    %272 = vmatprep.subr.mxu0 0.0
    %273 = vmatpush1.msra.mxu0 0.0
    %274 = vmatprep.subr.mxu0 0.0
    %275 = vmatpush1.msra.mxu0 0.0
    %276 = vmatprep.subr.mxu0 0.0
    %277 = vmatpush1.msra.mxu0 0.0
    %278 = vmatprep.subr.mxu0 0.0
    %279 = vmatpush1.msra.mxu0 0.0
    %280 = vmatprep.subr.mxu0 0.0
    %281 = vmatpush1.msra.mxu0 0.0
    %282 = vmatprep.subr.mxu0 0.0
    %283 = vmatpush1.msra.mxu0 0.0
    %284 = vmatprep.subr.mxu0 0.0
    %285 = vmatpush1.msra.mxu0 0.0
    %286 = vmatprep.mubr.f32.mxu0 0.0
    %287 = vmatmul.mubr.f32.gmra.mrb[0].mxu0 %v220
    %v288 = vpop.f32.mrb[0].mxu0
    %v289 = vadd.f32 %v217, %v288
    %v290 = vpop.f32.mrb[0].mxu0
    %291 = vdwg.mxu0
    %v292 = vtanh.pop %v289
    %v293 = vrot.slane %v115, 3
    %v294 = vrot.slane %v120, 2
    %v295 = vsel %vm131, %v294, %v293
    %v298 = vsel %vm140, %v292, 0
    %300 = vmatprep.subr.mxu0 0.0
    %301 = vmatpush1.msra.mxu0 %v14
    %302 = vmatprep.subr.mxu0 0.0
    %303 = vmatpush1.msra.mxu0 %v15
    %304 = vmatprep.subr.mxu0 0.0
    %305 = vmatpush1.msra.mxu0 %v16
    %306 = vmatprep.subr.mxu0 0.0
    %307 = vmatpush1.msra.mxu0 %v17
    %308 = vmatprep.subr.mxu0 0.0
    %309 = vmatpush1.msra.mxu0 %v18
    %310 = vmatprep.subr.mxu0 0.0
    %311 = vmatpush1.msra.mxu0 %v19
    %312 = vmatprep.subr.mxu0 0.0
    %313 = vmatpush1.msra.mxu0 %v20
    %314 = vmatprep.subr.mxu0 0.0
    %315 = vmatpush1.msra.mxu0 %v21
    %316 = vmatprep.subr.mxu0 0.0
    %317 = vmatpush1.msra.mxu0 0.0
    %318 = vmatprep.subr.mxu0 0.0
    %319 = vmatpush1.msra.mxu0 0.0
    %320 = vmatprep.subr.mxu0 0.0
    %321 = vmatpush1.msra.mxu0 0.0
    %322 = vmatprep.subr.mxu0 0.0
    %323 = vmatpush1.msra.mxu0 0.0
    %324 = vmatprep.subr.mxu0 0.0
    %325 = vmatpush1.msra.mxu0 0.0
    %326 = vmatprep.subr.mxu0 0.0
    %327 = vmatpush1.msra.mxu0 0.0
    %328 = vmatprep.subr.mxu0 0.0
    %329 = vmatpush1.msra.mxu0 0.0
    %330 = vmatprep.subr.mxu0 0.0
    %331 = vmatpush1.msra.mxu0 0.0
    %332 = vmatprep.subr.mxu0 0.0
    %333 = vmatpush1.msra.mxu0 0.0
    %334 = vmatprep.subr.mxu0 0.0
    %335 = vmatpush1.msra.mxu0 0.0
    %336 = vmatprep.subr.mxu0 0.0
    %337 = vmatpush1.msra.mxu0 0.0
    %338 = vmatprep.subr.mxu0 0.0
    %339 = vmatpush1.msra.mxu0 0.0
    %340 = vmatprep.subr.mxu0 0.0
    %341 = vmatpush1.msra.mxu0 0.0
    %342 = vmatprep.subr.mxu0 0.0
    %343 = vmatpush1.msra.mxu0 0.0
    %344 = vmatprep.subr.mxu0 0.0
    %345 = vmatpush1.msra.mxu0 0.0
    %346 = vmatprep.subr.mxu0 0.0
    %347 = vmatpush1.msra.mxu0 0.0
    %348 = vmatprep.subr.mxu0 0.0
    %349 = vmatpush1.msra.mxu0 0.0
    %350 = vmatprep.subr.mxu0 0.0
    %351 = vmatpush1.msra.mxu0 0.0
    %352 = vmatprep.subr.mxu0 0.0
    %353 = vmatpush1.msra.mxu0 0.0
    %354 = vmatprep.subr.mxu0 0.0
    %355 = vmatpush1.msra.mxu0 0.0
    %356 = vmatprep.subr.mxu0 0.0
    %357 = vmatpush1.msra.mxu0 0.0
    %358 = vmatprep.subr.mxu0 0.0
    %359 = vmatpush1.msra.mxu0 0.0
    %360 = vmatprep.subr.mxu0 0.0
    %361 = vmatpush1.msra.mxu0 0.0
    %362 = vmatprep.subr.mxu0 0.0
    %363 = vmatpush1.msra.mxu0 0.0
    %364 = vmatprep.mubr.f32.mxu0 0.0
    %365 = vmatmul.mubr.f32.gmra.mrb[0].mxu0 %v298
    %v366 = vpop.f32.mrb[0].mxu0
    %v367 = vadd.f32 %v295, %v366
    %v368 = vpop.f32.mrb[0].mxu0
    %369 = vdwg.mxu0
    %v370 = vtanh.pop %v367
    %v371 = vrot.slane %v115, 4
    %v372 = vrot.slane %v120, 3
    %v373 = vsel %vm131, %v372, %v371
    %v376 = vsel %vm140, %v370, 0
    %378 = vmatprep.subr.mxu0 0.0
    %379 = vmatpush1.msra.mxu0 %v14
    %380 = vmatprep.subr.mxu0 0.0
    %381 = vmatpush1.msra.mxu0 %v15
    %382 = vmatprep.subr.mxu0 0.0
    %383 = vmatpush1.msra.mxu0 %v16
    %384 = vmatprep.subr.mxu0 0.0
    %385 = vmatpush1.msra.mxu0 %v17
    %386 = vmatprep.subr.mxu0 0.0
    %387 = vmatpush1.msra.mxu0 %v18
    %388 = vmatprep.subr.mxu0 0.0
    %389 = vmatpush1.msra.mxu0 %v19
    %390 = vmatprep.subr.mxu0 0.0
    %391 = vmatpush1.msra.mxu0 %v20
    %392 = vmatprep.subr.mxu0 0.0
    %393 = vmatpush1.msra.mxu0 %v21
    %394 = vmatprep.subr.mxu0 0.0
    %395 = vmatpush1.msra.mxu0 0.0
    %396 = vmatprep.subr.mxu0 0.0
    %397 = vmatpush1.msra.mxu0 0.0
    %398 = vmatprep.subr.mxu0 0.0
    %399 = vmatpush1.msra.mxu0 0.0
    %400 = vmatprep.subr.mxu0 0.0
    %401 = vmatpush1.msra.mxu0 0.0
    %402 = vmatprep.subr.mxu0 0.0
    %403 = vmatpush1.msra.mxu0 0.0
    %404 = vmatprep.subr.mxu0 0.0
    %405 = vmatpush1.msra.mxu0 0.0
    %406 = vmatprep.subr.mxu0 0.0
    %407 = vmatpush1.msra.mxu0 0.0
    %408 = vmatprep.subr.mxu0 0.0
    %409 = vmatpush1.msra.mxu0 0.0
    %410 = vmatprep.subr.mxu0 0.0
    %411 = vmatpush1.msra.mxu0 0.0
    %412 = vmatprep.subr.mxu0 0.0
    %413 = vmatpush1.msra.mxu0 0.0
    %414 = vmatprep.subr.mxu0 0.0
    %415 = vmatpush1.msra.mxu0 0.0
    %416 = vmatprep.subr.mxu0 0.0
    %417 = vmatpush1.msra.mxu0 0.0
    %418 = vmatprep.subr.mxu0 0.0
    %419 = vmatpush1.msra.mxu0 0.0
    %420 = vmatprep.subr.mxu0 0.0
    %421 = vmatpush1.msra.mxu0 0.0
    %422 = vmatprep.subr.mxu0 0.0
    %423 = vmatpush1.msra.mxu0 0.0
    %424 = vmatprep.subr.mxu0 0.0
    %425 = vmatpush1.msra.mxu0 0.0
    %426 = vmatprep.subr.mxu0 0.0
    %427 = vmatpush1.msra.mxu0 0.0
    %428 = vmatprep.subr.mxu0 0.0
    %429 = vmatpush1.msra.mxu0 0.0
    %430 = vmatprep.subr.mxu0 0.0
    %431 = vmatpush1.msra.mxu0 0.0
    %432 = vmatprep.subr.mxu0 0.0
    %433 = vmatpush1.msra.mxu0 0.0
    %434 = vmatprep.subr.mxu0 0.0
    %435 = vmatpush1.msra.mxu0 0.0
    %436 = vmatprep.subr.mxu0 0.0
    %437 = vmatpush1.msra.mxu0 0.0
    %438 = vmatprep.subr.mxu0 0.0
    %439 = vmatpush1.msra.mxu0 0.0
    %440 = vmatprep.subr.mxu0 0.0
    %441 = vmatpush1.msra.mxu0 0.0
    %442 = vmatprep.mubr.f32.mxu0 0.0
    %443 = vmatmul.mubr.f32.gmra.mrb[0].mxu0 %v376
    %v444 = vpop.f32.mrb[0].mxu0
    %v445 = vadd.f32 %v373, %v444
    %v446 = vpop.f32.mrb[0].mxu0
    %447 = vdwg.mxu0
    %v448 = vtanh.pop %v445
    %v449 = vrot.slane %v115, 5
    %v450 = vrot.slane %v120, 4
    %v451 = vsel %vm131, %v450, %v449
    %v454 = vsel %vm140, %v448, 0
    %456 = vmatprep.subr.mxu0 0.0
    %457 = vmatpush1.msra.mxu0 %v14
    %458 = vmatprep.subr.mxu0 0.0
    %459 = vmatpush1.msra.mxu0 %v15
    %460 = vmatprep.subr.mxu0 0.0
    %461 = vmatpush1.msra.mxu0 %v16
    %462 = vmatprep.subr.mxu0 0.0
    %463 = vmatpush1.msra.mxu0 %v17
    %464 = vmatprep.subr.mxu0 0.0
    %465 = vmatpush1.msra.mxu0 %v18
    %466 = vmatprep.subr.mxu0 0.0
    %467 = vmatpush1.msra.mxu0 %v19
    %468 = vmatprep.subr.mxu0 0.0
    %469 = vmatpush1.msra.mxu0 %v20
    %470 = vmatprep.subr.mxu0 0.0
    %471 = vmatpush1.msra.mxu0 %v21
    %472 = vmatprep.subr.mxu0 0.0
    %473 = vmatpush1.msra.mxu0 0.0
    %474 = vmatprep.subr.mxu0 0.0
    %475 = vmatpush1.msra.mxu0 0.0
    %476 = vmatprep.subr.mxu0 0.0
    %477 = vmatpush1.msra.mxu0 0.0
    %478 = vmatprep.subr.mxu0 0.0
    %479 = vmatpush1.msra.mxu0 0.0
    %480 = vmatprep.subr.mxu0 0.0
    %481 = vmatpush1.msra.mxu0 0.0
    %482 = vmatprep.subr.mxu0 0.0
    %483 = vmatpush1.msra.mxu0 0.0
    %484 = vmatprep.subr.mxu0 0.0
    %485 = vmatpush1.msra.mxu0 0.0
    %486 = vmatprep.subr.mxu0 0.0
    %487 = vmatpush1.msra.mxu0 0.0
    %488 = vmatprep.subr.mxu0 0.0
    %489 = vmatpush1.msra.mxu0 0.0
    %490 = vmatprep.subr.mxu0 0.0
    %491 = vmatpush1.msra.mxu0 0.0
    %492 = vmatprep.subr.mxu0 0.0
    %493 = vmatpush1.msra.mxu0 0.0
    %494 = vmatprep.subr.mxu0 0.0
    %495 = vmatpush1.msra.mxu0 0.0
    %496 = vmatprep.subr.mxu0 0.0
    %497 = vmatpush1.msra.mxu0 0.0
    %498 = vmatprep.subr.mxu0 0.0
    %499 = vmatpush1.msra.mxu0 0.0
    %500 = vmatprep.subr.mxu0 0.0
    %501 = vmatpush1.msra.mxu0 0.0
    %502 = vmatprep.subr.mxu0 0.0
    %503 = vmatpush1.msra.mxu0 0.0
    %504 = vmatprep.subr.mxu0 0.0
    %505 = vmatpush1.msra.mxu0 0.0
    %506 = vmatprep.subr.mxu0 0.0
    %507 = vmatpush1.msra.mxu0 0.0
    %508 = vmatprep.subr.mxu0 0.0
    %509 = vmatpush1.msra.mxu0 0.0
    %510 = vmatprep.subr.mxu0 0.0
    %511 = vmatpush1.msra.mxu0 0.0
    %512 = vmatprep.subr.mxu0 0.0
    %513 = vmatpush1.msra.mxu0 0.0
    %514 = vmatprep.subr.mxu0 0.0
    %515 = vmatpush1.msra.mxu0 0.0
    %516 = vmatprep.subr.mxu0 0.0
    %517 = vmatpush1.msra.mxu0 0.0
    %518 = vmatprep.subr.mxu0 0.0
    %519 = vmatpush1.msra.mxu0 0.0
    %520 = vmatprep.mubr.f32.mxu0 0.0
    %521 = vmatmul.mubr.f32.gmra.mrb[0].mxu0 %v454
    %v522 = vpop.f32.mrb[0].mxu0
    %v523 = vadd.f32 %v451, %v522
    %v524 = vpop.f32.mrb[0].mxu0
    %525 = vdwg.mxu0
    %v526 = vtanh.pop %v523
    %v527 = vrot.slane %v115, 6
    %v528 = vrot.slane %v120, 5
    %v529 = vsel %vm131, %v528, %v527
    %v532 = vsel %vm140, %v526, 0
    %534 = vmatprep.subr.mxu0 0.0
    %535 = vmatpush1.msra.mxu0 %v14
    %536 = vmatprep.subr.mxu0 0.0
    %537 = vmatpush1.msra.mxu0 %v15
    %538 = vmatprep.subr.mxu0 0.0
    %539 = vmatpush1.msra.mxu0 %v16
    %540 = vmatprep.subr.mxu0 0.0
    %541 = vmatpush1.msra.mxu0 %v17
    %542 = vmatprep.subr.mxu0 0.0
    %543 = vmatpush1.msra.mxu0 %v18
    %544 = vmatprep.subr.mxu0 0.0
    %545 = vmatpush1.msra.mxu0 %v19
    %546 = vmatprep.subr.mxu0 0.0
    %547 = vmatpush1.msra.mxu0 %v20
    %548 = vmatprep.subr.mxu0 0.0
    %549 = vmatpush1.msra.mxu0 %v21
    %550 = vmatprep.subr.mxu0 0.0
    %551 = vmatpush1.msra.mxu0 0.0
    %552 = vmatprep.subr.mxu0 0.0
    %553 = vmatpush1.msra.mxu0 0.0
    %554 = vmatprep.subr.mxu0 0.0
    %555 = vmatpush1.msra.mxu0 0.0
    %556 = vmatprep.subr.mxu0 0.0
    %557 = vmatpush1.msra.mxu0 0.0
    %558 = vmatprep.subr.mxu0 0.0
    %559 = vmatpush1.msra.mxu0 0.0
    %560 = vmatprep.subr.mxu0 0.0
    %561 = vmatpush1.msra.mxu0 0.0
    %562 = vmatprep.subr.mxu0 0.0
    %563 = vmatpush1.msra.mxu0 0.0
    %564 = vmatprep.subr.mxu0 0.0
    %565 = vmatpush1.msra.mxu0 0.0
    %566 = vmatprep.subr.mxu0 0.0
    %567 = vmatpush1.msra.mxu0 0.0
    %568 = vmatprep.subr.mxu0 0.0
    %569 = vmatpush1.msra.mxu0 0.0
    %570 = vmatprep.subr.mxu0 0.0
    %571 = vmatpush1.msra.mxu0 0.0
    %572 = vmatprep.subr.mxu0 0.0
    %573 = vmatpush1.msra.mxu0 0.0
    %574 = vmatprep.subr.mxu0 0.0
    %575 = vmatpush1.msra.mxu0 0.0
    %576 = vmatprep.subr.mxu0 0.0
    %577 = vmatpush1.msra.mxu0 0.0
    %578 = vmatprep.subr.mxu0 0.0
    %579 = vmatpush1.msra.mxu0 0.0
    %580 = vmatprep.subr.mxu0 0.0
    %581 = vmatpush1.msra.mxu0 0.0
    %582 = vmatprep.subr.mxu0 0.0
    %583 = vmatpush1.msra.mxu0 0.0
    %584 = vmatprep.subr.mxu0 0.0
    %585 = vmatpush1.msra.mxu0 0.0
    %586 = vmatprep.subr.mxu0 0.0
    %587 = vmatpush1.msra.mxu0 0.0
    %588 = vmatprep.subr.mxu0 0.0
    %589 = vmatpush1.msra.mxu0 0.0
    %590 = vmatprep.subr.mxu0 0.0
    %591 = vmatpush1.msra.mxu0 0.0
    %592 = vmatprep.subr.mxu0 0.0
    %593 = vmatpush1.msra.mxu0 0.0
    %594 = vmatprep.subr.mxu0 0.0
    %595 = vmatpush1.msra.mxu0 0.0
    %596 = vmatprep.subr.mxu0 0.0
    %597 = vmatpush1.msra.mxu0 0.0
    %598 = vmatprep.mubr.f32.mxu0 0.0
    %599 = vmatmul.mubr.f32.gmra.mrb[0].mxu0 %v532
    %v600 = vpop.f32.mrb[0].mxu0
    %v601 = vadd.f32 %v529, %v600
    %v602 = vpop.f32.mrb[0].mxu0
    %603 = vdwg.mxu0
    %v604 = vtanh.pop %v601
    %v605 = vrot.slane %v115, 7
    %v606 = vrot.slane %v120, 6
    %v607 = vsel %vm131, %v606, %v605
    %v610 = vsel %vm140, %v604, 0
    %612 = vmatprep.subr.mxu0 0.0
    %613 = vmatpush1.msra.mxu0 %v14
    %614 = vmatprep.subr.mxu0 0.0
    %615 = vmatpush1.msra.mxu0 %v15
    %616 = vmatprep.subr.mxu0 0.0
    %617 = vmatpush1.msra.mxu0 %v16
    %618 = vmatprep.subr.mxu0 0.0
    %619 = vmatpush1.msra.mxu0 %v17
    %620 = vmatprep.subr.mxu0 0.0
    %621 = vmatpush1.msra.mxu0 %v18
    %622 = vmatprep.subr.mxu0 0.0
    %623 = vmatpush1.msra.mxu0 %v19
    %624 = vmatprep.subr.mxu0 0.0
    %625 = vmatpush1.msra.mxu0 %v20
    %626 = vmatprep.subr.mxu0 0.0
    %627 = vmatpush1.msra.mxu0 %v21
    %628 = vmatprep.subr.mxu0 0.0
    %629 = vmatpush1.msra.mxu0 0.0
    %630 = vmatprep.subr.mxu0 0.0
    %631 = vmatpush1.msra.mxu0 0.0
    %632 = vmatprep.subr.mxu0 0.0
    %633 = vmatpush1.msra.mxu0 0.0
    %634 = vmatprep.subr.mxu0 0.0
    %635 = vmatpush1.msra.mxu0 0.0
    %636 = vmatprep.subr.mxu0 0.0
    %637 = vmatpush1.msra.mxu0 0.0
    %638 = vmatprep.subr.mxu0 0.0
    %639 = vmatpush1.msra.mxu0 0.0
    %640 = vmatprep.subr.mxu0 0.0
    %641 = vmatpush1.msra.mxu0 0.0
    %642 = vmatprep.subr.mxu0 0.0
    %643 = vmatpush1.msra.mxu0 0.0
    %644 = vmatprep.subr.mxu0 0.0
    %645 = vmatpush1.msra.mxu0 0.0
    %646 = vmatprep.subr.mxu0 0.0
    %647 = vmatpush1.msra.mxu0 0.0
    %648 = vmatprep.subr.mxu0 0.0
    %649 = vmatpush1.msra.mxu0 0.0
    %650 = vmatprep.subr.mxu0 0.0
    %651 = vmatpush1.msra.mxu0 0.0
    %652 = vmatprep.subr.mxu0 0.0
    %653 = vmatpush1.msra.mxu0 0.0
    %654 = vmatprep.subr.mxu0 0.0
    %655 = vmatpush1.msra.mxu0 0.0
    %656 = vmatprep.subr.mxu0 0.0
    %657 = vmatpush1.msra.mxu0 0.0
    %658 = vmatprep.subr.mxu0 0.0
    %659 = vmatpush1.msra.mxu0 0.0
    %660 = vmatprep.subr.mxu0 0.0
    %661 = vmatpush1.msra.mxu0 0.0
    %662 = vmatprep.subr.mxu0 0.0
    %663 = vmatpush1.msra.mxu0 0.0
    %664 = vmatprep.subr.mxu0 0.0
    %665 = vmatpush1.msra.mxu0 0.0
    %666 = vmatprep.subr.mxu0 0.0
    %667 = vmatpush1.msra.mxu0 0.0
    %668 = vmatprep.subr.mxu0 0.0
    %669 = vmatpush1.msra.mxu0 0.0
    %670 = vmatprep.subr.mxu0 0.0
    %671 = vmatpush1.msra.mxu0 0.0
    %672 = vmatprep.subr.mxu0 0.0
    %673 = vmatpush1.msra.mxu0 0.0
    %674 = vmatprep.subr.mxu0 0.0
    %675 = vmatpush1.msra.mxu0 0.0
    %676 = vmatprep.mubr.f32.mxu0 0.0
    %677 = vmatmul.mubr.f32.gmra.mrb[0].mxu0 %v610
    %v678 = vpop.f32.mrb[0].mxu0
    %v679 = vadd.f32 %v607, %v678
    %v680 = vpop.f32.mrb[0].mxu0
    %681 = vdwg.mxu0
    %v682 = vtanh.pop %v679
    %v684 = vsel %vm140, %v682, 0
    %686 = vmatprep.subr.mxu0 0.0
    %687 = vmatpush1.msra.mxu0 %v14
    %688 = vmatprep.subr.mxu0 0.0
    %689 = vmatpush1.msra.mxu0 %v15
    %690 = vmatprep.subr.mxu0 0.0
    %691 = vmatpush1.msra.mxu0 %v16
    %692 = vmatprep.subr.mxu0 0.0
    %693 = vmatpush1.msra.mxu0 %v17
    %694 = vmatprep.subr.mxu0 0.0
    %695 = vmatpush1.msra.mxu0 %v18
    %696 = vmatprep.subr.mxu0 0.0
    %697 = vmatpush1.msra.mxu0 %v19
    %698 = vmatprep.subr.mxu0 0.0
    %699 = vmatpush1.msra.mxu0 %v20
    %700 = vmatprep.subr.mxu0 0.0
    %701 = vmatpush1.msra.mxu0 %v21
    %702 = vmatprep.subr.mxu0 0.0
    %703 = vmatpush1.msra.mxu0 0.0
    %704 = vmatprep.subr.mxu0 0.0
    %705 = vmatpush1.msra.mxu0 0.0
    %706 = vmatprep.subr.mxu0 0.0
    %707 = vmatpush1.msra.mxu0 0.0
    %708 = vmatprep.subr.mxu0 0.0
    %709 = vmatpush1.msra.mxu0 0.0
    %710 = vmatprep.subr.mxu0 0.0
    %711 = vmatpush1.msra.mxu0 0.0
    %712 = vmatprep.subr.mxu0 0.0
    %713 = vmatpush1.msra.mxu0 0.0
    %714 = vmatprep.subr.mxu0 0.0
    %715 = vmatpush1.msra.mxu0 0.0
    %716 = vmatprep.subr.mxu0 0.0
    %717 = vmatpush1.msra.mxu0 0.0
    %718 = vmatprep.subr.mxu0 0.0
    %719 = vmatpush1.msra.mxu0 0.0
    %720 = vmatprep.subr.mxu0 0.0
    %721 = vmatpush1.msra.mxu0 0.0
    %722 = vmatprep.subr.mxu0 0.0
    %723 = vmatpush1.msra.mxu0 0.0
    %724 = vmatprep.subr.mxu0 0.0
    %725 = vmatpush1.msra.mxu0 0.0
    %726 = vmatprep.subr.mxu0 0.0
    %727 = vmatpush1.msra.mxu0 0.0
    %728 = vmatprep.subr.mxu0 0.0
    %729 = vmatpush1.msra.mxu0 0.0
    %730 = vmatprep.subr.mxu0 0.0
    %731 = vmatpush1.msra.mxu0 0.0
    %732 = vmatprep.subr.mxu0 0.0
    %733 = vmatpush1.msra.mxu0 0.0
    %734 = vmatprep.subr.mxu0 0.0
    %735 = vmatpush1.msra.mxu0 0.0
    %736 = vmatprep.subr.mxu0 0.0
    %737 = vmatpush1.msra.mxu0 0.0
    %738 = vmatprep.subr.mxu0 0.0
    %739 = vmatpush1.msra.mxu0 0.0
    %740 = vmatprep.subr.mxu0 0.0
    %741 = vmatpush1.msra.mxu0 0.0
    %742 = vmatprep.subr.mxu0 0.0
    %743 = vmatpush1.msra.mxu0 0.0
    %744 = vmatprep.subr.mxu0 0.0
    %745 = vmatpush1.msra.mxu0 0.0
    %746 = vmatprep.subr.mxu0 0.0
    %747 = vmatpush1.msra.mxu0 0.0
    %748 = vmatprep.subr.mxu0 0.0
    %749 = vmatpush1.msra.mxu0 0.0
    %750 = vmatprep.mubr.f32.mxu0 0.0
    %751 = vmatmul.mubr.f32.gmra.mrb[0].mxu0 %v684
    %v752 = vpop.f32.mrb[0].mxu0
    %v753 = vadd.f32 %v36, %v752
    %v754 = vpop.f32.mrb[0].mxu0
    %755 = vdwg.mxu0
    %v756 = vtanh.pop %v753
    %v757 = vlaneseq
    %v758 = vshrl.u32 %v757, 7
    %v759 = vsub.s32 0, %v758
    %v760 = vrot.slane %v30, %v759
    %v762 = vsel %vm140, %v756, 0
    %764 = vmatprep.subr.mxu0 0.0
    %765 = vmatpush1.msra.mxu0 %v22
    %766 = vmatprep.subr.mxu0 0.0
    %767 = vmatpush1.msra.mxu0 %v23
    %768 = vmatprep.subr.mxu0 0.0
    %769 = vmatpush1.msra.mxu0 %v24
    %770 = vmatprep.subr.mxu0 0.0
    %771 = vmatpush1.msra.mxu0 %v25
    %772 = vmatprep.subr.mxu0 0.0
    %773 = vmatpush1.msra.mxu0 %v26
    %774 = vmatprep.subr.mxu0 0.0
    %775 = vmatpush1.msra.mxu0 %v27
    %776 = vmatprep.subr.mxu0 0.0
    %777 = vmatpush1.msra.mxu0 %v28
    %778 = vmatprep.subr.mxu0 0.0
    %779 = vmatpush1.msra.mxu0 %v29
    %780 = vmatprep.subr.mxu0 0.0
    %781 = vmatpush1.msra.mxu0 0.0
    %782 = vmatprep.subr.mxu0 0.0
    %783 = vmatpush1.msra.mxu0 0.0
    %784 = vmatprep.subr.mxu0 0.0
    %785 = vmatpush1.msra.mxu0 0.0
    %786 = vmatprep.subr.mxu0 0.0
    %787 = vmatpush1.msra.mxu0 0.0
    %788 = vmatprep.subr.mxu0 0.0
    %789 = vmatpush1.msra.mxu0 0.0
    %790 = vmatprep.subr.mxu0 0.0
    %791 = vmatpush1.msra.mxu0 0.0
    %792 = vmatprep.subr.mxu0 0.0
    %793 = vmatpush1.msra.mxu0 0.0
    %794 = vmatprep.subr.mxu0 0.0
    %795 = vmatpush1.msra.mxu0 0.0
    %796 = vmatprep.subr.mxu0 0.0
    %797 = vmatpush1.msra.mxu0 0.0
    %798 = vmatprep.subr.mxu0 0.0
    %799 = vmatpush1.msra.mxu0 0.0
    %800 = vmatprep.subr.mxu0 0.0
    %801 = vmatpush1.msra.mxu0 0.0
    %802 = vmatprep.subr.mxu0 0.0
    %803 = vmatpush1.msra.mxu0 0.0
    %804 = vmatprep.subr.mxu0 0.0
    %805 = vmatpush1.msra.mxu0 0.0
    %806 = vmatprep.subr.mxu0 0.0
    %807 = vmatpush1.msra.mxu0 0.0
    %808 = vmatprep.subr.mxu0 0.0
    %809 = vmatpush1.msra.mxu0 0.0
    %810 = vmatprep.subr.mxu0 0.0
    %811 = vmatpush1.msra.mxu0 0.0
    %812 = vmatprep.subr.mxu0 0.0
    %813 = vmatpush1.msra.mxu0 0.0
    %814 = vmatprep.subr.mxu0 0.0
    %815 = vmatpush1.msra.mxu0 0.0
    %816 = vmatprep.subr.mxu0 0.0
    %817 = vmatpush1.msra.mxu0 0.0
    %818 = vmatprep.subr.mxu0 0.0
    %819 = vmatpush1.msra.mxu0 0.0
    %820 = vmatprep.subr.mxu0 0.0
    %821 = vmatpush1.msra.mxu0 0.0
    %822 = vmatprep.subr.mxu0 0.0
    %823 = vmatpush1.msra.mxu0 0.0
    %824 = vmatprep.subr.mxu0 0.0
    %825 = vmatpush1.msra.mxu0 0.0
    %826 = vmatprep.subr.mxu0 0.0
    %827 = vmatpush1.msra.mxu0 0.0
    %828 = vmatprep.mubr.f32.mxu0 0.0
    %829 = vmatmul.mubr.f32.gmra.mrb[0].mxu0 %v762
    %v830 = vpop.f32.mrb[0].mxu0
    %v831 = vadd.f32 %v760, %v830
    %v832 = vpop.f32.mrb[0].mxu0
    %833 = vdwg.mxu0
    %vm834 = vcmask 17408
    %835 = vst.msk [vmem:[#allocation2] sm:$0x3] %vm834, %v831
    // Predicated region
    $region10: #{rnn_predictor_forward.1} parent=1 // pred_check
      _
    $region11: #{rnn_predictor_forward.1} parent=1 // pred_check_branch
      %837 = sbr.rel (0) target = $region13
    $region12: #{rnn_predictor_forward.1} parent=1 // pred_region
      %s839 = ssub.s32 32, 32
      %840 = vsyncadd [#allocation3], %s839
      %s842 = sshll.u32 [#allocation2], 4
      %s843 = int_to_ptr.vmem [resolvable:$true] %s842
      %845 = dma.vmem_to_hbm [thread:$0]  %s843, 32, %s2, [#allocation3]
    $region13: #{rnn_predictor_forward.1} parent=1 // pred_fallthru
      _
    // Predicated region
    $region14: #{rnn_predictor_forward.1} parent=1 // pred_check
      _
    $region15: #{rnn_predictor_forward.1} parent=1 // pred_check_branch
      %847 = sbr.rel (0) target = $region17
    $region16: #{rnn_predictor_forward.1} parent=1 // pred_region
      %848 = dma.done [#allocation3], 32
    $region17: #{rnn_predictor_forward.1} parent=1 // pred_fallthru
      _
    %849 = vsyncpa [#allocation3], 1

</llo_original>
